<compile_context>
chip_gen: v7x
topology: tpu7x:2x2x1
jax: 0.10.0
libtpu: 0.0.40
codegen_flags: <defaults>
</compile_context>

<pallas_src>
import math

import jax
import jax.numpy as jnp
from jax.experimental import pallas as pl
from jax.experimental.pallas import tpu as pltpu


def _round_up(x, m):
    return (x + m - 1) // m * m


def _sage_kernel(a_ref, xf_ref, xt_ref, dinv_ref, wl_ref, wr_ref, o_ref, acc_ref):
    k = pl.program_id(1)

    @pl.when(k == 0)
    def _():
        acc_ref[...] = jnp.zeros_like(acc_ref)

    # Streaming neighbor-sum for this (row tile, K tile): bf16 MXU, f32 accum.
    acc_ref[...] += jnp.dot(a_ref[...], xf_ref[...],
                            preferred_element_type=jnp.float32)

    @pl.when(k == pl.num_programs(1) - 1)
    def _():
        # Mean aggregation: scale accumulated edge counts by 1/deg (f32, VPU).
        agg = acc_ref[...] * dinv_ref[...]
        # Two accumulating projections (split K) instead of concat + one matmul.
        out = jnp.dot(agg.astype(wl_ref.dtype), wl_ref[...],
                      preferred_element_type=jnp.float32)
        out = out + jnp.dot(xt_ref[...], wr_ref[...],
                            preferred_element_type=jnp.float32)
        o_ref[...] = out.astype(o_ref.dtype)


def sage_conv_forward(x, edge_index, w_l, w_r, *, row_tile=256, k_tile=512):
    """GraphSAGE (mean) forward: out = mean_agg(x) @ w_l.T + x @ w_r.T."""
    n, din = x.shape
    dout = w_l.shape[0]
    assert w_l.shape == (dout, din) and w_r.shape == (dout, din)
    assert edge_index.shape[0] == 2

    # ---- tiling / padding (lane & sublane aligned) ---------------------------
    tm = min(row_tile, _round_up(n, 8))        # row tile (multiple of 8)
    n_rows = _round_up(n, tm)
    kt = min(k_tile, _round_up(n, 128))        # K tile (multiple of 128)
    n_cols = _round_up(n, kt)
    din_p = _round_up(din, 128)
    dout_p = _round_up(dout, 128)
    n_pad = max(n_rows, n_cols)

    # ---- aggregation operator (edge scatter stays in the JAX wrapper) --------
    # TODO(synk): a CSR / scalar-prefetch aggregation would read O(E) instead of
    # the dense O(N^2) adjacency; the dense build is kept here for simplicity.
    src, dst = edge_index[0], edge_index[1]
    counts = jnp.zeros((n_rows, n_cols), jnp.float32).at[dst, src].add(1.0)
    deg_inv = 1.0 / jnp.maximum(counts.sum(axis=1, keepdims=True), 1.0)
    deg_inv = deg_inv.astype(jnp.float32)              # (n_rows, 1), f32
    adj = counts.astype(jnp.bfloat16)                  # exact 0/1/... counts in bf16

    x_p = jnp.zeros((n_pad, din_p), jnp.bfloat16).at[:n, :din].set(
        x.astype(jnp.bfloat16))
    wl_p = jnp.zeros((din_p, dout_p), jnp.bfloat16).at[:din, :dout].set(
        w_l.T.astype(jnp.bfloat16))
    wr_p = jnp.zeros((din_p, dout_p), jnp.bfloat16).at[:din, :dout].set(
        w_r.T.astype(jnp.bfloat16))

    grid = (n_rows // tm, n_cols // kt)
    cost = pl.CostEstimate(
        flops=2 * n_rows * n_cols * din_p + 4 * n_rows * din_p * dout_p,
        transcendentals=0,
        bytes_accessed=(n_rows * n_cols * 2            # adjacency (bf16)
                        + grid[0] * n_cols * din_p * 2 # streamed neighbor feats
                        + n_rows * din_p * 2           # self feats
                        + 2 * din_p * dout_p * 2       # weights
                        + n_rows * 4                   # 1/deg
                        + n_rows * dout_p * 4))        # output

    out_p = pl.pallas_call(
        _sage_kernel,
        out_shape=jax.ShapeDtypeStruct((n_rows, dout_p), jnp.float32),
        grid_spec=pltpu.PrefetchScalarGridSpec(
            num_scalar_prefetch=0,
            grid=grid,
            in_specs=[
                pl.BlockSpec((tm, kt), lambda i, k: (i, k)),         # adjacency tile
                pl.BlockSpec((kt, din_p), lambda i, k: (k, 0)),      # neighbor feats
                pl.BlockSpec((tm, din_p), lambda i, k: (i, 0)),      # self feats
                pl.BlockSpec((tm, 1), lambda i, k: (i, 0)),          # 1/deg (f32)
                pl.BlockSpec((din_p, dout_p), lambda i, k: (0, 0)),  # W_l^T
                pl.BlockSpec((din_p, dout_p), lambda i, k: (0, 0)),  # W_r^T
            ],
            out_specs=pl.BlockSpec((tm, dout_p), lambda i, k: (i, 0)),
            scratch_shapes=[pltpu.VMEM((tm, din_p), jnp.float32)],
        ),
        compiler_params=pltpu.CompilerParams(
            dimension_semantics=("parallel", "arbitrary"),
            vmem_limit_bytes=32 * 1024 * 1024),
        cost_estimate=cost,
    )(adj, x_p, x_p, deg_inv, wl_p, wr_p)

    return out_p[:n, :dout].astype(x.dtype)


if __name__ == "__main__":
    num_nodes, num_edges = 200, 800
    dim_in, dim_out = 32, 64

    key = jax.random.PRNGKey(0)
    k_x, k_src, k_dst, k_wl, k_wr = jax.random.split(key, 5)

    x = jax.random.normal(k_x, (num_nodes, dim_in), jnp.float32)
    src = jax.random.randint(k_src, (num_edges,), 0, num_nodes)
    dst = jax.random.randint(k_dst, (num_edges,), 0, num_nodes)
    edge_index = jnp.stack([src, dst]).astype(jnp.int32)

    stdv = 1.0 / math.sqrt(dim_in)
    w_l = jax.random.uniform(k_wl, (dim_out, dim_in), jnp.float32, -stdv, stdv)
    w_r = jax.random.uniform(k_wr, (dim_out, dim_in), jnp.float32, -stdv, stdv)

    out = jax.block_until_ready(sage_conv_forward(x, edge_index, w_l, w_r))

    # Pure-JAX reference (mean-aggregation SAGEConv, bias=False).
    adj_ref = jnp.zeros((num_nodes, num_nodes), jnp.float32).at[dst, src].add(1.0)
    deg_ref = jnp.maximum(adj_ref.sum(axis=1, keepdims=True), 1.0)
    hi = jax.lax.Precision.HIGHEST
    agg_ref = jnp.dot(adj_ref / deg_ref, x, precision=hi)
    ref = jnp.dot(agg_ref, w_l.T, precision=hi) + jnp.dot(x, w_r.T, precision=hi)

    assert out.shape == (num_nodes, dim_out)
    max_err = float(jnp.max(jnp.abs(out - ref)))
    assert jnp.allclose(out, ref, atol=2e-2, rtol=2e-2), (
        f"mismatch vs reference (max abs err {max_err})")

    print("KERNEL_OK")
</pallas_src>

<mosaic_0001>
module attributes {stable_mosaic.version = 11 : i64} {
  func.func @_sage_kernel(%arg0: i32, %arg1: i32, %arg2: memref<200x256xbf16, #tpu.memory_space<vmem>>, %arg3: memref<256x128xbf16, #tpu.memory_space<vmem>>, %arg4: memref<200x128xbf16, #tpu.memory_space<vmem>>, %arg5: memref<200x1xf32, #tpu.memory_space<vmem>>, %arg6: memref<128x128xbf16, #tpu.memory_space<vmem>>, %arg7: memref<128x128xbf16, #tpu.memory_space<vmem>>, %arg8: memref<200x128xf32, #tpu.memory_space<vmem>>, %arg9: memref<200x128xf32, #tpu.memory_space<vmem>>) attributes {dimension_semantics = [#tpu.dimension_semantics<parallel>, #tpu.dimension_semantics<arbitrary>], iteration_bounds = array<i64: 1, 1>, scalar_prefetch = 0 : i64, scratch_operands = 1 : i64, tpu.core_type = #tpu.core_type<tc>, window_params = [{transform_indices = @transform_0, window_bounds = array<i64: 200, 256>}, {transform_indices = @transform_1, window_bounds = array<i64: 256, 128>}, {transform_indices = @transform_2, window_bounds = array<i64: 200, 128>}, {transform_indices = @transform_3, window_bounds = array<i64: 200, 1>}, {pipeline_mode = #tpu.pipeline_mode<synchronous>, transform_indices = @transform_4, window_bounds = array<i64: 128, 128>}, {pipeline_mode = #tpu.pipeline_mode<synchronous>, transform_indices = @transform_5, window_bounds = array<i64: 128, 128>}, {transform_indices = @transform_6, window_bounds = array<i64: 200, 128>}]} {
    %c0_i32 = arith.constant 0 : i32
    %0 = arith.cmpi eq, %arg1, %c0_i32 : i32
    %1 = arith.extui %0 : i1 to i32
    %c0_i32_0 = arith.constant 0 : i32
    %2 = arith.cmpi ne, %1, %c0_i32_0 : i32
    scf.if %2 {
      %cst_10 = arith.constant 0.000000e+00 : f32
      %12 = vector.broadcast %cst_10 : f32 to vector<200x128xf32>
      %c0_11 = arith.constant 0 : index
      %c0_12 = arith.constant 0 : index
      %13 = vector.load %arg9[%c0_11, %c0_12] : memref<200x128xf32, #tpu.memory_space<vmem>>, vector<200x128xf32>
      tpu.vector_store %arg9[%c0_11, %c0_12], %12 {strides = array<i32>} : memref<200x128xf32, #tpu.memory_space<vmem>>, vector<200x128xf32>,
    } else {
    }
    %c0 = arith.constant 0 : index
    %c0_1 = arith.constant 0 : index
    %3 = vector.load %arg9[%c0, %c0_1] : memref<200x128xf32, #tpu.memory_space<vmem>>, vector<200x128xf32>
    %c0_2 = arith.constant 0 : index
    %c0_3 = arith.constant 0 : index
    %4 = vector.load %arg2[%c0_2, %c0_3] : memref<200x256xbf16, #tpu.memory_space<vmem>>, vector<200x256xbf16>
    %c0_4 = arith.constant 0 : index
    %c0_5 = arith.constant 0 : index
    %5 = vector.load %arg3[%c0_4, %c0_5] : memref<256x128xbf16, #tpu.memory_space<vmem>>, vector<256x128xbf16>
    %cst = arith.constant dense<0.000000e+00> : vector<200x128xf32>
    %6 = tpu.matmul %4, %5, %cst {dimension_numbers = #tpu.dot_dimension_numbers<[1], [0], [0], [1], [0, 0, 1, 1], [], []>} : vector<200x256xbf16>, vector<256x128xbf16>, vector<200x128xf32> -> vector<200x128xf32>
    %7 = arith.addf %3, %6 : vector<200x128xf32>
    %c0_6 = arith.constant 0 : index
    %c0_7 = arith.constant 0 : index
    %8 = vector.load %arg9[%c0_6, %c0_7] : memref<200x128xf32, #tpu.memory_space<vmem>>, vector<200x128xf32>
    tpu.vector_store %arg9[%c0_6, %c0_7], %7 {strides = array<i32>} : memref<200x128xf32, #tpu.memory_space<vmem>>, vector<200x128xf32>,
    %c0_i32_8 = arith.constant 0 : i32
    %9 = arith.cmpi eq, %arg1, %c0_i32_8 : i32
    %10 = arith.extui %9 : i1 to i32
    %c0_i32_9 = arith.constant 0 : i32
    %11 = arith.cmpi ne, %10, %c0_i32_9 : i32
    scf.if %11 {
      %c0_10 = arith.constant 0 : index
      %c0_11 = arith.constant 0 : index
      %12 = vector.load %arg9[%c0_10, %c0_11] : memref<200x128xf32, #tpu.memory_space<vmem>>, vector<200x128xf32>
      %c0_12 = arith.constant 0 : index
      %c0_13 = arith.constant 0 : index
      %13 = vector.load %arg5[%c0_12, %c0_13] : memref<200x1xf32, #tpu.memory_space<vmem>>, vector<200x1xf32>
      %14 = vector.broadcast %13 : vector<200x1xf32> to vector<200x128xf32>
      %15 = arith.mulf %12, %14 : vector<200x128xf32>
      %16 = arith.truncf %15 : vector<200x128xf32> to vector<200x128xbf16>
      %c0_14 = arith.constant 0 : index
      %c0_15 = arith.constant 0 : index
      %17 = vector.load %arg6[%c0_14, %c0_15] : memref<128x128xbf16, #tpu.memory_space<vmem>>, vector<128x128xbf16>
      %cst_16 = arith.constant dense<0.000000e+00> : vector<200x128xf32>
      %18 = tpu.matmul %16, %17, %cst_16 {dimension_numbers = #tpu.dot_dimension_numbers<[1], [0], [0], [1], [0, 0, 1, 1], [], []>} : vector<200x128xbf16>, vector<128x128xbf16>, vector<200x128xf32> -> vector<200x128xf32>
      %c0_17 = arith.constant 0 : index
      %c0_18 = arith.constant 0 : index
      %19 = vector.load %arg4[%c0_17, %c0_18] : memref<200x128xbf16, #tpu.memory_space<vmem>>, vector<200x128xbf16>
      %c0_19 = arith.constant 0 : index
      %c0_20 = arith.constant 0 : index
      %20 = vector.load %arg7[%c0_19, %c0_20] : memref<128x128xbf16, #tpu.memory_space<vmem>>, vector<128x128xbf16>
      %cst_21 = arith.constant dense<0.000000e+00> : vector<200x128xf32>
      %21 = tpu.matmul %19, %20, %cst_21 {dimension_numbers = #tpu.dot_dimension_numbers<[1], [0], [0], [1], [0, 0, 1, 1], [], []>} : vector<200x128xbf16>, vector<128x128xbf16>, vector<200x128xf32> -> vector<200x128xf32>
      %22 = arith.addf %18, %21 : vector<200x128xf32>
      %c0_22 = arith.constant 0 : index
      %c0_23 = arith.constant 0 : index
      %23 = vector.load %arg8[%c0_22, %c0_23] : memref<200x128xf32, #tpu.memory_space<vmem>>, vector<200x128xf32>
      tpu.vector_store %arg8[%c0_22, %c0_23], %22 {strides = array<i32>} : memref<200x128xf32, #tpu.memory_space<vmem>>, vector<200x128xf32>,
    } else {
    }
    return
  }
  func.func @transform_0(%arg0: i32, %arg1: i32) -> (i32, i32) {
    %c0_i32 = arith.constant 0 : i32
    return %arg0, %arg1 : i32, i32
  }
  func.func @transform_1(%arg0: i32, %arg1: i32) -> (i32, i32) {
    %c0_i32 = arith.constant 0 : i32
    %c0_i32_0 = arith.constant 0 : i32
    return %arg1, %c0_i32 : i32, i32
  }
  func.func @transform_2(%arg0: i32, %arg1: i32) -> (i32, i32) {
    %c0_i32 = arith.constant 0 : i32
    %c0_i32_0 = arith.constant 0 : i32
    return %arg0, %c0_i32 : i32, i32
  }
  func.func @transform_3(%arg0: i32, %arg1: i32) -> (i32, i32) {
    %c0_i32 = arith.constant 0 : i32
    %c0_i32_0 = arith.constant 0 : i32
    return %arg0, %c0_i32 : i32, i32
  }
  func.func @transform_4(%arg0: i32, %arg1: i32) -> (i32, i32) {
    %c0_i32 = arith.constant 0 : i32
    %c0_i32_0 = arith.constant 0 : i32
    %c0_i32_1 = arith.constant 0 : i32
    return %c0_i32, %c0_i32_0 : i32, i32
  }
  func.func @transform_5(%arg0: i32, %arg1: i32) -> (i32, i32) {
    %c0_i32 = arith.constant 0 : i32
    %c0_i32_0 = arith.constant 0 : i32
    %c0_i32_1 = arith.constant 0 : i32
    return %c0_i32, %c0_i32_0 : i32, i32
  }
  func.func @transform_6(%arg0: i32, %arg1: i32) -> (i32, i32) {
    %c0_i32 = arith.constant 0 : i32
    %c0_i32_0 = arith.constant 0 : i32
    return %arg0, %c0_i32 : i32, i32
  }
}

</mosaic_0001>

<llo_original>
// kernel: tpu_custom_call.1
$region0: #{tpu_custom_call.1}
  #allocation0 [shape = 'u32[]', space=smem, size = 0x4, offset = 0x4, fixed_abs, tag = 'smem constant byte address 0x4 - core index']
  #allocation1 [shape = 'u32[144,128]{1,0:T(1,128)}', space=vmem, size = 0x12000, scoped, tag = 'internal scratch']
  #allocation2 [shape = 'f32[200,128]{1,0:T(8,128)}', space=vmem, size = 0x19000, scoped, tag = 'scratch operand']
  %s0 = inlined_call_operand.vmem [shape: bf16[200,256], index: 0, kind: input, shape index: {}]
  %s1 = inlined_call_operand.hbm [shape: bf16[256,128], index: 1, kind: input, shape index: {}]
  %s2 = inlined_call_operand.hbm [shape: bf16[256,128], index: 2, kind: input, shape index: {}]
  %s3 = inlined_call_operand.vmem [shape: f32[200,1], index: 3, kind: input, shape index: {}]
  %s4 = inlined_call_operand.hbm [shape: bf16[128,128], index: 4, kind: input, shape index: {}]
  %s5 = inlined_call_operand.hbm [shape: bf16[128,128], index: 5, kind: input, shape index: {}]
  %s6 = inlined_call_operand.hbm [shape: f32[200,128], index: 6, kind: output, shape index: {}]
  %s7 = sld [smem:[#allocation0]]
  $region58: #{tpu_custom_call.1} parent=0
    _
  %s9 = ssub.s32 1, %s7
  %s10 = scalar_select 0, %s9, %s7
  $region1: #{tpu_custom_call.1} parent=0
    #allocation3 [shape = 'u8[65536]{0}', space=vmem, size = 0x10000, scoped, tag = 'input window, operand 1, single buffered']
    #allocation4 [shape = 's32[1]{0}', space=sflag, size = 0x4, scoped, tag = 'scoped memory for tpu_custom_call.1']
    #allocation5 [shape = 's32[1]{0}', space=sflag, size = 0x4, scoped, tag = 'scoped memory for tpu_custom_call.1']
    #allocation6 [shape = 'u8[51200]{0}', space=vmem, size = 0xc800, scoped, tag = 'input window, operand 2, single buffered']
    #allocation7 [shape = 's32[1]{0}', space=sflag, size = 0x4, scoped, tag = 'scoped memory for tpu_custom_call.1']
    #allocation8 [shape = 'u8[32768]{0}', space=vmem, size = 0x8000, scoped, tag = 'input window, operand 4, single buffered']
    #allocation9 [shape = 'u8[32768]{0}', space=vmem, size = 0x8000, scoped, tag = 'input window, operand 5, single buffered']
    #allocation10 [shape = 's32[1]{0}', space=sflag, size = 0x4, scoped, tag = 'scoped memory for tpu_custom_call.1']
    #allocation11 [shape = 'u8[102400]{0}', space=vmem, size = 0x19000, scoped, tag = 'output window, operand 0, single buffered']
    %11 = vsyncpa [#allocation4], 0
    %12 = vsyncpa [#allocation7], 0
    %13 = vsyncpa [#allocation10], 0
    %14 = vsyncpa [#allocation5], 0
    // Predicated region
    $region2: #{tpu_custom_call.1} parent=1 // pred_check
      _
    $region3: #{tpu_custom_call.1} parent=1 // pred_check_branch
      %16 = sbr.rel (0) target = $region5
    $region4: #{tpu_custom_call.1} parent=1 // pred_region
      _
    $region5: #{tpu_custom_call.1} parent=1 // pred_fallthru
      _
    // Predicated region
    $region6: #{tpu_custom_call.1} parent=1 // pred_check
      _
    $region7: #{tpu_custom_call.1} parent=1 // pred_check_branch
      %18 = sbr.rel (0) target = $region9
    $region8: #{tpu_custom_call.1} parent=1 // pred_region
      %s20 = ssub.s32 2048, 2048
      %21 = vsyncadd [#allocation4], %s20
      %s22 = sshll.u32 [#allocation3], 4
      %s23 = int_to_ptr.vmem [resolvable:$true] %s22
      %28 = dma.hbm_to_vmem [thread:$0]  %s1, 2048, %s23, [#allocation4], 64, 64, 4
    $region9: #{tpu_custom_call.1} parent=1 // pred_fallthru
      _
    // Predicated region
    $region10: #{tpu_custom_call.1} parent=1 // pred_check
      _
    $region11: #{tpu_custom_call.1} parent=1 // pred_check_branch
      %30 = sbr.rel (0) target = $region13
    $region12: #{tpu_custom_call.1} parent=1 // pred_region
      %s32 = ssub.s32 1600, 1600
      %33 = vsyncadd [#allocation7], %s32
      %s34 = sshll.u32 [#allocation6], 4
      %s35 = int_to_ptr.vmem [resolvable:$true] %s34
      %40 = dma.hbm_to_vmem [thread:$0]  %s2, 1600, %s35, [#allocation7], 64, 64, 4
    $region13: #{tpu_custom_call.1} parent=1 // pred_fallthru
      _
    // Predicated region
    $region14: #{tpu_custom_call.1} parent=1 // pred_check
      _
    $region15: #{tpu_custom_call.1} parent=1 // pred_check_branch
      %42 = sbr.rel (0) target = $region17
    $region16: #{tpu_custom_call.1} parent=1 // pred_region
      _
    $region17: #{tpu_custom_call.1} parent=1 // pred_fallthru
      _
    // Predicated region
    $region18: #{tpu_custom_call.1} parent=1 // pred_check
      _
    $region19: #{tpu_custom_call.1} parent=1 // pred_check_branch
      %44 = sbr.rel (0) target = $region21
    $region20: #{tpu_custom_call.1} parent=1 // pred_region
      %s46 = ssub.s32 1024, 1024
      %47 = vsyncadd [#allocation7], %s46
      %s48 = sshll.u32 [#allocation8], 4
      %s49 = int_to_ptr.vmem [resolvable:$true] %s48
      %54 = dma.hbm_to_vmem [thread:$0]  %s4, 1024, %s49, [#allocation7], 64, 64, 4
    $region21: #{tpu_custom_call.1} parent=1 // pred_fallthru
      _
    // Predicated region
    $region22: #{tpu_custom_call.1} parent=1 // pred_check
      _
    $region23: #{tpu_custom_call.1} parent=1 // pred_check_branch
      %56 = sbr.rel (0) target = $region25
    $region24: #{tpu_custom_call.1} parent=1 // pred_region
      %s58 = ssub.s32 1024, 1024
      %59 = vsyncadd [#allocation10], %s58
      %s60 = sshll.u32 [#allocation9], 4
      %s61 = int_to_ptr.vmem [resolvable:$true] %s60
      %66 = dma.hbm_to_vmem [thread:$0]  %s5, 1024, %s61, [#allocation10], 64, 64, 4
    $region25: #{tpu_custom_call.1} parent=1 // pred_fallthru
      _
    // Predicated region
    $region26: #{tpu_custom_call.1} parent=1 // pred_check
      _
    $region27: #{tpu_custom_call.1} parent=1 // pred_check_branch
      %68 = sbr.rel (0) target = $region29
    $region28: #{tpu_custom_call.1} parent=1 // pred_region
      %69 = dma.done [#allocation4], 2048
    $region29: #{tpu_custom_call.1} parent=1 // pred_fallthru
      _
    // Predicated region
    $region30: #{tpu_custom_call.1} parent=1 // pred_check
      _
    $region31: #{tpu_custom_call.1} parent=1 // pred_check_branch
      %71 = sbr.rel (0) target = $region33
    $region32: #{tpu_custom_call.1} parent=1 // pred_region
      %72 = dma.done [#allocation7], 1600
    $region33: #{tpu_custom_call.1} parent=1 // pred_fallthru
      _
    // Predicated region
    $region34: #{tpu_custom_call.1} parent=1 // pred_check
      _
    $region35: #{tpu_custom_call.1} parent=1 // pred_check_branch
      %74 = sbr.rel (0) target = $region37
    $region36: #{tpu_custom_call.1} parent=1 // pred_region
      %75 = dma.done [#allocation7], 1024
    $region37: #{tpu_custom_call.1} parent=1 // pred_fallthru
      _
    // Predicated region
    $region38: #{tpu_custom_call.1} parent=1 // pred_check
      _
    $region39: #{tpu_custom_call.1} parent=1 // pred_check_branch
      %77 = sbr.rel (0) target = $region41
    $region40: #{tpu_custom_call.1} parent=1 // pred_region
      %78 = dma.done [#allocation10], 1024
    $region41: #{tpu_custom_call.1} parent=1 // pred_fallthru
      _
    %p80 = scmp.eq.s32.totalorder 0, 0
    // Predicated region
    $region42: #{tpu_custom_call.1} parent=1 // pred_check
      %p81 = pneg %p80
    $region43: #{tpu_custom_call.1} parent=1 // pred_check_branch
      %83 = sbr.rel (%p81) target = $region45
    $region44: #{tpu_custom_call.1} parent=1 // pred_region
      %84 = vst [vmem:[#allocation2] sm:$0xff] 0.0
      %85 = vst [vmem:[#allocation2 + $0x8] sm:$0xff] 0.0
      %86 = vst [vmem:[#allocation2 + $0x10] sm:$0xff] 0.0
      %87 = vst [vmem:[#allocation2 + $0x18] sm:$0xff] 0.0
      %88 = vst [vmem:[#allocation2 + $0x20] sm:$0xff] 0.0
      %89 = vst [vmem:[#allocation2 + $0x28] sm:$0xff] 0.0
      %90 = vst [vmem:[#allocation2 + $0x30] sm:$0xff] 0.0
      %91 = vst [vmem:[#allocation2 + $0x38] sm:$0xff] 0.0
      %92 = vst [vmem:[#allocation2 + $0x40] sm:$0xff] 0.0
      %93 = vst [vmem:[#allocation2 + $0x48] sm:$0xff] 0.0
      %94 = vst [vmem:[#allocation2 + $0x50] sm:$0xff] 0.0
      %95 = vst [vmem:[#allocation2 + $0x58] sm:$0xff] 0.0
      %96 = vst [vmem:[#allocation2 + $0x60] sm:$0xff] 0.0
      %97 = vst [vmem:[#allocation2 + $0x68] sm:$0xff] 0.0
      %98 = vst [vmem:[#allocation2 + $0x70] sm:$0xff] 0.0
      %99 = vst [vmem:[#allocation2 + $0x78] sm:$0xff] 0.0
      %100 = vst [vmem:[#allocation2 + $0x80] sm:$0xff] 0.0
      %101 = vst [vmem:[#allocation2 + $0x88] sm:$0xff] 0.0
      %102 = vst [vmem:[#allocation2 + $0x90] sm:$0xff] 0.0
      %103 = vst [vmem:[#allocation2 + $0x98] sm:$0xff] 0.0
      %104 = vst [vmem:[#allocation2 + $0xa0] sm:$0xff] 0.0
      %105 = vst [vmem:[#allocation2 + $0xa8] sm:$0xff] 0.0
      %106 = vst [vmem:[#allocation2 + $0xb0] sm:$0xff] 0.0
      %107 = vst [vmem:[#allocation2 + $0xb8] sm:$0xff] 0.0
      %108 = vst [vmem:[#allocation2 + $0xc0] sm:$0xff] 0.0
    $region45: #{tpu_custom_call.1} parent=1 // pred_fallthru
      _
    %v109 = vld [vmem:[#allocation2] sm:$0xff]
    %v110 = vld [vmem:[#allocation2 + $0x8] sm:$0xff]
    %v111 = vld [vmem:[#allocation2 + $0x10] sm:$0xff]
    %v112 = vld [vmem:[#allocation2 + $0x18] sm:$0xff]
    %v113 = vld [vmem:[#allocation2 + $0x20] sm:$0xff]
    %v114 = vld [vmem:[#allocation2 + $0x28] sm:$0xff]
    %v115 = vld [vmem:[#allocation2 + $0x30] sm:$0xff]
    %v116 = vld [vmem:[#allocation2 + $0x38] sm:$0xff]
    %v117 = vld [vmem:[#allocation2 + $0x40] sm:$0xff]
    %v118 = vld [vmem:[#allocation2 + $0x48] sm:$0xff]
    %v119 = vld [vmem:[#allocation2 + $0x50] sm:$0xff]
    %v120 = vld [vmem:[#allocation2 + $0x58] sm:$0xff]
    %v121 = vld [vmem:[#allocation2 + $0x60] sm:$0xff]
    %v122 = vld [vmem:[#allocation2 + $0x68] sm:$0xff]
    %v123 = vld [vmem:[#allocation2 + $0x70] sm:$0xff]
    %v124 = vld [vmem:[#allocation2 + $0x78] sm:$0xff]
    %v125 = vld [vmem:[#allocation2 + $0x80] sm:$0xff]
    %v126 = vld [vmem:[#allocation2 + $0x88] sm:$0xff]
    %v127 = vld [vmem:[#allocation2 + $0x90] sm:$0xff]
    %v128 = vld [vmem:[#allocation2 + $0x98] sm:$0xff]
    %v129 = vld [vmem:[#allocation2 + $0xa0] sm:$0xff]
    %v130 = vld [vmem:[#allocation2 + $0xa8] sm:$0xff]
    %v131 = vld [vmem:[#allocation2 + $0xb0] sm:$0xff]
    %v132 = vld [vmem:[#allocation2 + $0xb8] sm:$0xff]
    %v133 = vld [vmem:[#allocation2 + $0xc0] sm:$0xff]
    %v134 = vld [vmem:[%s0] sm:$0xff]
    %v135 = vld [vmem:[%s0 + $0x8] sm:$0xff]
    %v136 = vld [vmem:[%s0 + $0x10] sm:$0xff]
    %v137 = vld [vmem:[%s0 + $0x18] sm:$0xff]
    %v138 = vld [vmem:[%s0 + $0x20] sm:$0xff]
    %v139 = vld [vmem:[%s0 + $0x28] sm:$0xff]
    %v140 = vld [vmem:[%s0 + $0x30] sm:$0xff]
    %v141 = vld [vmem:[%s0 + $0x38] sm:$0xff]
    %v142 = vld [vmem:[%s0 + $0x40] sm:$0xff]
    %v143 = vld [vmem:[%s0 + $0x48] sm:$0xff]
    %v144 = vld [vmem:[%s0 + $0x50] sm:$0xff]
    %v145 = vld [vmem:[%s0 + $0x58] sm:$0xff]
    %v146 = vld [vmem:[%s0 + $0x60] sm:$0xff]
    %v147 = vld [vmem:[%s0 + $0x68] sm:$0xff]
    %v148 = vld [vmem:[%s0 + $0x70] sm:$0xff]
    %v149 = vld [vmem:[%s0 + $0x78] sm:$0xff]
    %v150 = vld [vmem:[%s0 + $0x80] sm:$0xff]
    %v151 = vld [vmem:[%s0 + $0x88] sm:$0xff]
    %v152 = vld [vmem:[%s0 + $0x90] sm:$0xff]
    %v153 = vld [vmem:[%s0 + $0x98] sm:$0xff]
    %v154 = vld [vmem:[%s0 + $0xa0] sm:$0xff]
    %v155 = vld [vmem:[%s0 + $0xa8] sm:$0xff]
    %v156 = vld [vmem:[%s0 + $0xb0] sm:$0xff]
    %v157 = vld [vmem:[%s0 + $0xb8] sm:$0xff]
    %v158 = vld [vmem:[%s0 + $0xc0] sm:$0xff]
    %v159 = vld [vmem:[#allocation3] sm:$0xf]
    %v160 = vld [vmem:[#allocation3 + $0x4] sm:$0xf]
    %v161 = vld [vmem:[#allocation3 + $0x8] sm:$0xf]
    %v162 = vld [vmem:[#allocation3 + $0xc] sm:$0xf]
    %v163 = vld [vmem:[#allocation3 + $0x10] sm:$0xf]
    %v164 = vld [vmem:[#allocation3 + $0x14] sm:$0xf]
    %v165 = vld [vmem:[#allocation3 + $0x18] sm:$0xf]
    %v166 = vld [vmem:[#allocation3 + $0x1c] sm:$0xf]
    %v167 = vld [vmem:[#allocation3 + $0x20] sm:$0xf]
    %v168 = vld [vmem:[#allocation3 + $0x24] sm:$0xf]
    %v169 = vld [vmem:[#allocation3 + $0x28] sm:$0xf]
    %v170 = vld [vmem:[#allocation3 + $0x2c] sm:$0xf]
    %v171 = vld [vmem:[#allocation3 + $0x30] sm:$0xf]
    %v172 = vld [vmem:[#allocation3 + $0x34] sm:$0xf]
    %v173 = vld [vmem:[#allocation3 + $0x38] sm:$0xf]
    %v174 = vld [vmem:[#allocation3 + $0x3c] sm:$0xf]
    %v175 = vld [vmem:[#allocation3 + $0x40] sm:$0xf]
    %v176 = vld [vmem:[#allocation3 + $0x44] sm:$0xf]
    %v177 = vld [vmem:[#allocation3 + $0x48] sm:$0xf]
    %v178 = vld [vmem:[#allocation3 + $0x4c] sm:$0xf]
    %v179 = vld [vmem:[#allocation3 + $0x50] sm:$0xf]
    %v180 = vld [vmem:[#allocation3 + $0x54] sm:$0xf]
    %v181 = vld [vmem:[#allocation3 + $0x58] sm:$0xf]
    %v182 = vld [vmem:[#allocation3 + $0x5c] sm:$0xf]
    %v183 = vld [vmem:[#allocation3 + $0x60] sm:$0xf]
    %v184 = vld [vmem:[#allocation3 + $0x64] sm:$0xf]
    %v185 = vld [vmem:[#allocation3 + $0x68] sm:$0xf]
    %v186 = vld [vmem:[#allocation3 + $0x6c] sm:$0xf]
    %v187 = vld [vmem:[#allocation3 + $0x70] sm:$0xf]
    %v188 = vld [vmem:[#allocation3 + $0x74] sm:$0xf]
    %v189 = vld [vmem:[#allocation3 + $0x78] sm:$0xf]
    %v190 = vld [vmem:[#allocation3 + $0x7c] sm:$0xf]
    %v216 = vunpack.c.l.b16 %v134
    %v217 = vunpack.c.h.b16 %v134
    %v218 = vunpack.c.l.b16 %v135
    %v219 = vunpack.c.h.b16 %v135
    %v220 = vunpack.c.l.b16 %v136
    %v221 = vunpack.c.h.b16 %v136
    %v222 = vunpack.c.l.b16 %v137
    %v223 = vunpack.c.h.b16 %v137
    %v224 = vunpack.c.l.b16 %v138
    %v225 = vunpack.c.h.b16 %v138
    %v226 = vunpack.c.l.b16 %v139
    %v227 = vunpack.c.h.b16 %v139
    %v228 = vunpack.c.l.b16 %v140
    %v229 = vunpack.c.h.b16 %v140
    %v230 = vunpack.c.l.b16 %v141
    %v231 = vunpack.c.h.b16 %v141
    %v232 = vunpack.c.l.b16 %v142
    %v233 = vunpack.c.h.b16 %v142
    %v234 = vunpack.c.l.b16 %v143
    %v235 = vunpack.c.h.b16 %v143
    %v236 = vunpack.c.l.b16 %v144
    %v237 = vunpack.c.h.b16 %v144
    %v238 = vunpack.c.l.b16 %v145
    %v239 = vunpack.c.h.b16 %v145
    %v240 = vunpack.c.l.b16 %v146
    %v241 = vunpack.c.h.b16 %v146
    %v242 = vunpack.c.l.b16 %v147
    %v243 = vunpack.c.h.b16 %v147
    %v244 = vunpack.c.l.b16 %v148
    %v245 = vunpack.c.h.b16 %v148
    %v246 = vunpack.c.l.b16 %v149
    %v247 = vunpack.c.h.b16 %v149
    %v248 = vunpack.c.l.b16 %v150
    %v249 = vunpack.c.h.b16 %v150
    %v250 = vunpack.c.l.b16 %v151
    %v251 = vunpack.c.h.b16 %v151
    %v252 = vunpack.c.l.b16 %v152
    %v253 = vunpack.c.h.b16 %v152
    %v254 = vunpack.c.l.b16 %v153
    %v255 = vunpack.c.h.b16 %v153
    %v256 = vunpack.c.l.b16 %v154
    %v257 = vunpack.c.h.b16 %v154
    %v258 = vunpack.c.l.b16 %v155
    %v259 = vunpack.c.h.b16 %v155
    %v260 = vunpack.c.l.b16 %v156
    %v261 = vunpack.c.h.b16 %v156
    %v262 = vunpack.c.l.b16 %v157
    %v263 = vunpack.c.h.b16 %v157
    %v264 = vunpack.c.l.b16 %v158
    %v265 = vunpack.c.h.b16 %v158
    %v266 = vpack.c.b16 %v218, %v216
    %v267 = vpack.c.b16 %v219, %v217
    %v268 = vpack.c.b16 %v222, %v220
    %v269 = vpack.c.b16 %v223, %v221
    %v270 = vpack.c.b16 %v226, %v224
    %v271 = vpack.c.b16 %v227, %v225
    %v272 = vpack.c.b16 %v230, %v228
    %v273 = vpack.c.b16 %v231, %v229
    %v274 = vpack.c.b16 %v234, %v232
    %v275 = vpack.c.b16 %v235, %v233
    %v276 = vpack.c.b16 %v238, %v236
    %v277 = vpack.c.b16 %v239, %v237
    %v278 = vpack.c.b16 %v242, %v240
    %v279 = vpack.c.b16 %v243, %v241
    %v280 = vpack.c.b16 %v246, %v244
    %v281 = vpack.c.b16 %v247, %v245
    %v282 = vpack.c.b16 %v250, %v248
    %v283 = vpack.c.b16 %v251, %v249
    %v284 = vpack.c.b16 %v254, %v252
    %v285 = vpack.c.b16 %v255, %v253
    %v286 = vpack.c.b16 %v258, %v256
    %v287 = vpack.c.b16 %v259, %v257
    %v288 = vpack.c.b16 %v262, %v260
    %v289 = vpack.c.b16 %v263, %v261
    %v290 = vpack.c.b16 %v264, %v264
    %v291 = vpack.c.b16 %v265, %v265
    %v350 = vunpack.c.l.b16 %v159
    %v351 = vunpack.c.l.b16 %v160
    %v352 = vunpack.c.l.b16 %v161
    %v353 = vunpack.c.l.b16 %v162
    %v354 = vunpack.c.l.b16 %v163
    %v355 = vunpack.c.l.b16 %v164
    %v356 = vunpack.c.l.b16 %v165
    %v357 = vunpack.c.l.b16 %v166
    %v358 = vunpack.c.l.b16 %v167
    %v359 = vunpack.c.l.b16 %v168
    %v360 = vunpack.c.l.b16 %v169
    %v361 = vunpack.c.l.b16 %v170
    %v362 = vunpack.c.l.b16 %v171
    %v363 = vunpack.c.l.b16 %v172
    %v364 = vunpack.c.l.b16 %v173
    %v365 = vunpack.c.l.b16 %v174
    %v366 = vunpack.c.l.b16 %v175
    %v367 = vunpack.c.l.b16 %v176
    %v368 = vunpack.c.l.b16 %v177
    %v369 = vunpack.c.l.b16 %v178
    %v370 = vunpack.c.l.b16 %v179
    %v371 = vunpack.c.l.b16 %v180
    %v372 = vunpack.c.l.b16 %v181
    %v373 = vunpack.c.l.b16 %v182
    %v374 = vunpack.c.l.b16 %v183
    %v375 = vunpack.c.l.b16 %v184
    %v376 = vunpack.c.l.b16 %v185
    %v377 = vunpack.c.l.b16 %v186
    %v378 = vunpack.c.l.b16 %v187
    %v379 = vunpack.c.l.b16 %v188
    %v380 = vunpack.c.l.b16 %v189
    %v381 = vunpack.c.l.b16 %v190
    %v382 = vpack.c.b16 %v351, %v350
    %v383 = vpack.c.b16 %v353, %v352
    %v384 = vpack.c.b16 %v355, %v354
    %v385 = vpack.c.b16 %v357, %v356
    %v386 = vpack.c.b16 %v359, %v358
    %v387 = vpack.c.b16 %v361, %v360
    %v388 = vpack.c.b16 %v363, %v362
    %v389 = vpack.c.b16 %v365, %v364
    %v390 = vpack.c.b16 %v367, %v366
    %v391 = vpack.c.b16 %v369, %v368
    %v392 = vpack.c.b16 %v371, %v370
    %v393 = vpack.c.b16 %v373, %v372
    %v394 = vpack.c.b16 %v375, %v374
    %v395 = vpack.c.b16 %v377, %v376
    %v396 = vpack.c.b16 %v379, %v378
    %v397 = vpack.c.b16 %v381, %v380
    %414 = vmatprep.subr.bf16.mxu0 0
    %415 = vmatpush1.bf16.msra.mxu0 %v382
    %416 = vmatprep.subr.bf16.mxu0 0
    %417 = vmatpush1.bf16.msra.mxu0 %v383
    %418 = vmatprep.subr.bf16.mxu0 0
    %419 = vmatpush1.bf16.msra.mxu0 %v384
    %420 = vmatprep.subr.bf16.mxu0 0
    %421 = vmatpush1.bf16.msra.mxu0 %v385
    %422 = vmatprep.subr.bf16.mxu0 0
    %423 = vmatpush1.bf16.msra.mxu0 %v386
    %424 = vmatprep.subr.bf16.mxu0 0
    %425 = vmatpush1.bf16.msra.mxu0 %v387
    %426 = vmatprep.subr.bf16.mxu0 0
    %427 = vmatpush1.bf16.msra.mxu0 %v388
    %428 = vmatprep.subr.bf16.mxu0 0
    %429 = vmatpush1.bf16.msra.mxu0 %v389
    %430 = vmatprep.subr.bf16.mxu0 0
    %431 = vmatpush1.bf16.msra.mxu0 %v390
    %432 = vmatprep.subr.bf16.mxu0 0
    %433 = vmatpush1.bf16.msra.mxu0 %v391
    %434 = vmatprep.subr.bf16.mxu0 0
    %435 = vmatpush1.bf16.msra.mxu0 %v392
    %436 = vmatprep.subr.bf16.mxu0 0
    %437 = vmatpush1.bf16.msra.mxu0 %v393
    %438 = vmatprep.subr.bf16.mxu0 0
    %439 = vmatpush1.bf16.msra.mxu0 %v394
    %440 = vmatprep.subr.bf16.mxu0 0
    %441 = vmatpush1.bf16.msra.mxu0 %v395
    %442 = vmatprep.subr.bf16.mxu0 0
    %443 = vmatpush1.bf16.msra.mxu0 %v396
    %444 = vmatprep.subr.bf16.mxu0 0
    %445 = vmatpush1.bf16.msra.mxu0 %v397
    %446 = vmatprep.mubr.bf16.mxu0 %v267
    %447 = vmatmul.mubr.bf16.gmra.mrb[0].mxu0 %v266
    %v448 = vpop.f32.mrb[0].mxu0
    %v449 = vadd.f32 0.0, %v448
    %v450 = vpop.f32.mrb[0].mxu0
    %v451 = vpop.f32.mrb[0].mxu0
    %v452 = vadd.f32 0.0, %v451
    %v453 = vpop.f32.mrb[0].mxu0
    %454 = vmatprep.mubr.bf16.mxu0 %v269
    %455 = vmatmul.mubr.bf16.gmra.mrb[0].mxu0 %v268
    %v456 = vpop.f32.mrb[0].mxu0
    %v457 = vadd.f32 0.0, %v456
    %v458 = vpop.f32.mrb[0].mxu0
    %v459 = vpop.f32.mrb[0].mxu0
    %v460 = vadd.f32 0.0, %v459
    %v461 = vpop.f32.mrb[0].mxu0
    %462 = vmatprep.mubr.bf16.mxu0 %v271
    %463 = vmatmul.mubr.bf16.gmra.mrb[0].mxu0 %v270
    %v464 = vpop.f32.mrb[0].mxu0
    %v465 = vadd.f32 0.0, %v464
    %v466 = vpop.f32.mrb[0].mxu0
    %v467 = vpop.f32.mrb[0].mxu0
    %v468 = vadd.f32 0.0, %v467
    %v469 = vpop.f32.mrb[0].mxu0
    %470 = vmatprep.mubr.bf16.mxu0 %v273
    %471 = vmatmul.mubr.bf16.gmra.mrb[0].mxu0 %v272
    %v472 = vpop.f32.mrb[0].mxu0
    %v473 = vadd.f32 0.0, %v472
    %v474 = vpop.f32.mrb[0].mxu0
    %v475 = vpop.f32.mrb[0].mxu0
    %v476 = vadd.f32 0.0, %v475
    %v477 = vpop.f32.mrb[0].mxu0
    %478 = vmatprep.mubr.bf16.mxu0 %v275
    %479 = vmatmul.mubr.bf16.gmra.mrb[0].mxu0 %v274
    %v480 = vpop.f32.mrb[0].mxu0
    %v481 = vadd.f32 0.0, %v480
    %v482 = vpop.f32.mrb[0].mxu0
    %v483 = vpop.f32.mrb[0].mxu0
    %v484 = vadd.f32 0.0, %v483
    %v485 = vpop.f32.mrb[0].mxu0
    %486 = vmatprep.mubr.bf16.mxu0 %v277
    %487 = vmatmul.mubr.bf16.gmra.mrb[0].mxu0 %v276
    %v488 = vpop.f32.mrb[0].mxu0
    %v489 = vadd.f32 0.0, %v488
    %v490 = vpop.f32.mrb[0].mxu0
    %v491 = vpop.f32.mrb[0].mxu0
    %v492 = vadd.f32 0.0, %v491
    %v493 = vpop.f32.mrb[0].mxu0
    %494 = vmatprep.mubr.bf16.mxu0 %v279
    %495 = vmatmul.mubr.bf16.gmra.mrb[0].mxu0 %v278
    %v496 = vpop.f32.mrb[0].mxu0
    %v497 = vadd.f32 0.0, %v496
    %v498 = vpop.f32.mrb[0].mxu0
    %v499 = vpop.f32.mrb[0].mxu0
    %v500 = vadd.f32 0.0, %v499
    %v501 = vpop.f32.mrb[0].mxu0
    %502 = vmatprep.mubr.bf16.mxu0 %v281
    %503 = vmatmul.mubr.bf16.gmra.mrb[0].mxu0 %v280
    %v504 = vpop.f32.mrb[0].mxu0
    %v505 = vadd.f32 0.0, %v504
    %v506 = vpop.f32.mrb[0].mxu0
    %v507 = vpop.f32.mrb[0].mxu0
    %v508 = vadd.f32 0.0, %v507
    %v509 = vpop.f32.mrb[0].mxu0
    %510 = vmatprep.mubr.bf16.mxu0 %v283
    %511 = vmatmul.mubr.bf16.gmra.mrb[0].mxu0 %v282
    %v512 = vpop.f32.mrb[0].mxu0
    %v513 = vadd.f32 0.0, %v512
    %v514 = vpop.f32.mrb[0].mxu0
    %v515 = vpop.f32.mrb[0].mxu0
    %v516 = vadd.f32 0.0, %v515
    %v517 = vpop.f32.mrb[0].mxu0
    %518 = vmatprep.mubr.bf16.mxu0 %v285
    %519 = vmatmul.mubr.bf16.gmra.mrb[0].mxu0 %v284
    %v520 = vpop.f32.mrb[0].mxu0
    %v521 = vadd.f32 0.0, %v520
    %v522 = vpop.f32.mrb[0].mxu0
    %v523 = vpop.f32.mrb[0].mxu0
    %v524 = vadd.f32 0.0, %v523
    %v525 = vpop.f32.mrb[0].mxu0
    %526 = vmatprep.mubr.bf16.mxu0 %v287
    %527 = vmatmul.mubr.bf16.gmra.mrb[0].mxu0 %v286
    %v528 = vpop.f32.mrb[0].mxu0
    %v529 = vadd.f32 0.0, %v528
    %v530 = vpop.f32.mrb[0].mxu0
    %v531 = vpop.f32.mrb[0].mxu0
    %v532 = vadd.f32 0.0, %v531
    %v533 = vpop.f32.mrb[0].mxu0
    %534 = vmatprep.mubr.bf16.mxu0 %v289
    %535 = vmatmul.mubr.bf16.gmra.mrb[0].mxu0 %v288
    %v536 = vpop.f32.mrb[0].mxu0
    %v537 = vadd.f32 0.0, %v536
    %v538 = vpop.f32.mrb[0].mxu0
    %v539 = vpop.f32.mrb[0].mxu0
    %v540 = vadd.f32 0.0, %v539
    %v541 = vpop.f32.mrb[0].mxu0
    %542 = vmatprep.mubr.bf16.mxu0 %v291
    %543 = vmatmul.mubr.bf16.gmra.mrb[0].mxu0 %v290
    %v544 = vpop.f32.mrb[0].mxu0
    %v545 = vadd.f32 0.0, %v544
    %v546 = vpop.f32.mrb[0].mxu0
    %v547 = vpop.f32.mrb[0].mxu0
    %v548 = vpop.f32.mrb[0].mxu0
    %549 = vdwg.mxu0
    %v550 = vadd.f32 %v109, %v449
    %v551 = vadd.f32 %v110, %v452
    %v552 = vadd.f32 %v111, %v457
    %v553 = vadd.f32 %v112, %v460
    %v554 = vadd.f32 %v113, %v465
    %v555 = vadd.f32 %v114, %v468
    %v556 = vadd.f32 %v115, %v473
    %v557 = vadd.f32 %v116, %v476
    %v558 = vadd.f32 %v117, %v481
    %v559 = vadd.f32 %v118, %v484
    %v560 = vadd.f32 %v119, %v489
    %v561 = vadd.f32 %v120, %v492
    %v562 = vadd.f32 %v121, %v497
    %v563 = vadd.f32 %v122, %v500
    %v564 = vadd.f32 %v123, %v505
    %v565 = vadd.f32 %v124, %v508
    %v566 = vadd.f32 %v125, %v513
    %v567 = vadd.f32 %v126, %v516
    %v568 = vadd.f32 %v127, %v521
    %v569 = vadd.f32 %v128, %v524
    %v570 = vadd.f32 %v129, %v529
    %v571 = vadd.f32 %v130, %v532
    %v572 = vadd.f32 %v131, %v537
    %v573 = vadd.f32 %v132, %v540
    %v574 = vadd.f32 %v133, %v545
    %575 = vst [vmem:[#allocation2] sm:$0xff] %v550
    %576 = vst [vmem:[#allocation2 + $0x8] sm:$0xff] %v551
    %577 = vst [vmem:[#allocation2 + $0x10] sm:$0xff] %v552
    %578 = vst [vmem:[#allocation2 + $0x18] sm:$0xff] %v553
    %579 = vst [vmem:[#allocation2 + $0x20] sm:$0xff] %v554
    %580 = vst [vmem:[#allocation2 + $0x28] sm:$0xff] %v555
    %581 = vst [vmem:[#allocation2 + $0x30] sm:$0xff] %v556
    %582 = vst [vmem:[#allocation2 + $0x38] sm:$0xff] %v557
    %583 = vst [vmem:[#allocation2 + $0x40] sm:$0xff] %v558
    %584 = vst [vmem:[#allocation2 + $0x48] sm:$0xff] %v559
    %585 = vst [vmem:[#allocation2 + $0x50] sm:$0xff] %v560
    %586 = vst [vmem:[#allocation2 + $0x58] sm:$0xff] %v561
    %587 = vst [vmem:[#allocation2 + $0x60] sm:$0xff] %v562
    %588 = vst [vmem:[#allocation2 + $0x68] sm:$0xff] %v563
    %589 = vst [vmem:[#allocation2 + $0x70] sm:$0xff] %v564
    %590 = vst [vmem:[#allocation2 + $0x78] sm:$0xff] %v565
    %591 = vst [vmem:[#allocation2 + $0x80] sm:$0xff] %v566
    %592 = vst [vmem:[#allocation2 + $0x88] sm:$0xff] %v567
    %593 = vst [vmem:[#allocation2 + $0x90] sm:$0xff] %v568
    %594 = vst [vmem:[#allocation2 + $0x98] sm:$0xff] %v569
    %595 = vst [vmem:[#allocation2 + $0xa0] sm:$0xff] %v570
    %596 = vst [vmem:[#allocation2 + $0xa8] sm:$0xff] %v571
    %597 = vst [vmem:[#allocation2 + $0xb0] sm:$0xff] %v572
    %598 = vst [vmem:[#allocation2 + $0xb8] sm:$0xff] %v573
    %599 = vst [vmem:[#allocation2 + $0xc0] sm:$0xff] %v574
    // Predicated region
    $region46: #{tpu_custom_call.1} parent=1 // pred_check
      %p600 = pneg %p80
    $region47: #{tpu_custom_call.1} parent=1 // pred_check_branch
      %602 = sbr.rel (%p600) target = $region49
    $region48: #{tpu_custom_call.1} parent=1 // pred_region
      %v603 = vld [vmem:[#allocation2] sm:$0xff]
      %v604 = vld [vmem:[#allocation2 + $0x8] sm:$0xff]
      %v605 = vld [vmem:[#allocation2 + $0x10] sm:$0xff]
      %v606 = vld [vmem:[#allocation2 + $0x18] sm:$0xff]
      %v607 = vld [vmem:[#allocation2 + $0x20] sm:$0xff]
      %v608 = vld [vmem:[#allocation2 + $0x28] sm:$0xff]
      %v609 = vld [vmem:[#allocation2 + $0x30] sm:$0xff]
      %v610 = vld [vmem:[#allocation2 + $0x38] sm:$0xff]
      %v611 = vld [vmem:[#allocation2 + $0x40] sm:$0xff]
      %v612 = vld [vmem:[#allocation2 + $0x48] sm:$0xff]
      %v613 = vld [vmem:[#allocation2 + $0x50] sm:$0xff]
      %v614 = vld [vmem:[#allocation2 + $0x58] sm:$0xff]
      %v615 = vld [vmem:[#allocation2 + $0x60] sm:$0xff]
      %v616 = vld [vmem:[#allocation2 + $0x68] sm:$0xff]
      %v617 = vld [vmem:[#allocation2 + $0x70] sm:$0xff]
      %v618 = vld [vmem:[#allocation2 + $0x78] sm:$0xff]
      %v619 = vld [vmem:[#allocation2 + $0x80] sm:$0xff]
      %v620 = vld [vmem:[#allocation2 + $0x88] sm:$0xff]
      %v621 = vld [vmem:[#allocation2 + $0x90] sm:$0xff]
      %v622 = vld [vmem:[#allocation2 + $0x98] sm:$0xff]
      %v623 = vld [vmem:[#allocation2 + $0xa0] sm:$0xff]
      %v624 = vld [vmem:[#allocation2 + $0xa8] sm:$0xff]
      %v625 = vld [vmem:[#allocation2 + $0xb0] sm:$0xff]
      %v626 = vld [vmem:[#allocation2 + $0xb8] sm:$0xff]
      %v627 = vld [vmem:[#allocation2 + $0xc0] sm:$0xff]
      %v628 = vld [vmem:[%s3] sm:$0xff]
      %v629 = vld [vmem:[%s3 + $0x8] sm:$0xff]
      %v630 = vld [vmem:[%s3 + $0x10] sm:$0xff]
      %v631 = vld [vmem:[%s3 + $0x18] sm:$0xff]
      %v632 = vld [vmem:[%s3 + $0x20] sm:$0xff]
      %v633 = vld [vmem:[%s3 + $0x28] sm:$0xff]
      %v634 = vld [vmem:[%s3 + $0x30] sm:$0xff]
      %v635 = vld [vmem:[%s3 + $0x38] sm:$0xff]
      %v636 = vld [vmem:[%s3 + $0x40] sm:$0xff]
      %v637 = vld [vmem:[%s3 + $0x48] sm:$0xff]
      %v638 = vld [vmem:[%s3 + $0x50] sm:$0xff]
      %v639 = vld [vmem:[%s3 + $0x58] sm:$0xff]
      %v640 = vld [vmem:[%s3 + $0x60] sm:$0xff]
      %v641 = vld [vmem:[%s3 + $0x68] sm:$0xff]
      %v642 = vld [vmem:[%s3 + $0x70] sm:$0xff]
      %v643 = vld [vmem:[%s3 + $0x78] sm:$0xff]
      %v644 = vld [vmem:[%s3 + $0x80] sm:$0xff]
      %v645 = vld [vmem:[%s3 + $0x88] sm:$0xff]
      %v646 = vld [vmem:[%s3 + $0x90] sm:$0xff]
      %v647 = vld [vmem:[%s3 + $0x98] sm:$0xff]
      %v648 = vld [vmem:[%s3 + $0xa0] sm:$0xff]
      %v649 = vld [vmem:[%s3 + $0xa8] sm:$0xff]
      %v650 = vld [vmem:[%s3 + $0xb0] sm:$0xff]
      %v651 = vld [vmem:[%s3 + $0xb8] sm:$0xff]
      %v652 = vld [vmem:[%s3 + $0xc0] sm:$0xff]
      %654 = vset.pattern.permute.xlu0 0
      %655 = vperm.xlu0 %654, %v628
      %v656 = vpop.permute.xlu0 %655
      %659 = vset.pattern.permute.xlu0 0
      %660 = vperm.xlu0 %659, %v629
      %v661 = vpop.permute.xlu0 %660
      %664 = vset.pattern.permute.xlu0 0
      %665 = vperm.xlu0 %664, %v630
      %v666 = vpop.permute.xlu0 %665
      %669 = vset.pattern.permute.xlu0 0
      %670 = vperm.xlu0 %669, %v631
      %v671 = vpop.permute.xlu0 %670
      %674 = vset.pattern.permute.xlu0 0
      %675 = vperm.xlu0 %674, %v632
      %v676 = vpop.permute.xlu0 %675
      %679 = vset.pattern.permute.xlu0 0
      %680 = vperm.xlu0 %679, %v633
      %v681 = vpop.permute.xlu0 %680
      %684 = vset.pattern.permute.xlu0 0
      %685 = vperm.xlu0 %684, %v634
      %v686 = vpop.permute.xlu0 %685
      %689 = vset.pattern.permute.xlu0 0
      %690 = vperm.xlu0 %689, %v635
      %v691 = vpop.permute.xlu0 %690
      %694 = vset.pattern.permute.xlu0 0
      %695 = vperm.xlu0 %694, %v636
      %v696 = vpop.permute.xlu0 %695
      %699 = vset.pattern.permute.xlu0 0
      %700 = vperm.xlu0 %699, %v637
      %v701 = vpop.permute.xlu0 %700
      %704 = vset.pattern.permute.xlu0 0
      %705 = vperm.xlu0 %704, %v638
      %v706 = vpop.permute.xlu0 %705
      %709 = vset.pattern.permute.xlu0 0
      %710 = vperm.xlu0 %709, %v639
      %v711 = vpop.permute.xlu0 %710
      %714 = vset.pattern.permute.xlu0 0
      %715 = vperm.xlu0 %714, %v640
      %v716 = vpop.permute.xlu0 %715
      %719 = vset.pattern.permute.xlu0 0
      %720 = vperm.xlu0 %719, %v641
      %v721 = vpop.permute.xlu0 %720
      %724 = vset.pattern.permute.xlu0 0
      %725 = vperm.xlu0 %724, %v642
      %v726 = vpop.permute.xlu0 %725
      %729 = vset.pattern.permute.xlu0 0
      %730 = vperm.xlu0 %729, %v643
      %v731 = vpop.permute.xlu0 %730
      %734 = vset.pattern.permute.xlu0 0
      %735 = vperm.xlu0 %734, %v644
      %v736 = vpop.permute.xlu0 %735
      %739 = vset.pattern.permute.xlu0 0
      %740 = vperm.xlu0 %739, %v645
      %v741 = vpop.permute.xlu0 %740
      %744 = vset.pattern.permute.xlu0 0
      %745 = vperm.xlu0 %744, %v646
      %v746 = vpop.permute.xlu0 %745
      %749 = vset.pattern.permute.xlu0 0
      %750 = vperm.xlu0 %749, %v647
      %v751 = vpop.permute.xlu0 %750
      %754 = vset.pattern.permute.xlu0 0
      %755 = vperm.xlu0 %754, %v648
      %v756 = vpop.permute.xlu0 %755
      %759 = vset.pattern.permute.xlu0 0
      %760 = vperm.xlu0 %759, %v649
      %v761 = vpop.permute.xlu0 %760
      %764 = vset.pattern.permute.xlu0 0
      %765 = vperm.xlu0 %764, %v650
      %v766 = vpop.permute.xlu0 %765
      %769 = vset.pattern.permute.xlu0 0
      %770 = vperm.xlu0 %769, %v651
      %v771 = vpop.permute.xlu0 %770
      %774 = vset.pattern.permute.xlu0 0
      %775 = vperm.xlu0 %774, %v652
      %v776 = vpop.permute.xlu0 %775
      %v778 = vmul.f32 %v603, %v656
      %v779 = vmul.f32 %v604, %v661
      %v780 = vmul.f32 %v605, %v666
      %v781 = vmul.f32 %v606, %v671
      %v782 = vmul.f32 %v607, %v676
      %v783 = vmul.f32 %v608, %v681
      %v784 = vmul.f32 %v609, %v686
      %v785 = vmul.f32 %v610, %v691
      %v786 = vmul.f32 %v611, %v696
      %v787 = vmul.f32 %v612, %v701
      %v788 = vmul.f32 %v613, %v706
      %v789 = vmul.f32 %v614, %v711
      %v790 = vmul.f32 %v615, %v716
      %v791 = vmul.f32 %v616, %v721
      %v792 = vmul.f32 %v617, %v726
      %v793 = vmul.f32 %v618, %v731
      %v794 = vmul.f32 %v619, %v736
      %v795 = vmul.f32 %v620, %v741
      %v796 = vmul.f32 %v621, %v746
      %v797 = vmul.f32 %v622, %v751
      %v798 = vmul.f32 %v623, %v756
      %v799 = vmul.f32 %v624, %v761
      %v800 = vmul.f32 %v625, %v766
      %v801 = vmul.f32 %v626, %v771
      %v802 = vmul.f32 %v627, %v776
      %v803 = vpack.c.bf16 %v779, %v778
      %v804 = vpack.c.bf16 %v781, %v780
      %v805 = vpack.c.bf16 %v783, %v782
      %v806 = vpack.c.bf16 %v785, %v784
      %v807 = vpack.c.bf16 %v787, %v786
      %v808 = vpack.c.bf16 %v789, %v788
      %v809 = vpack.c.bf16 %v791, %v790
      %v810 = vpack.c.bf16 %v793, %v792
      %v811 = vpack.c.bf16 %v795, %v794
      %v812 = vpack.c.bf16 %v797, %v796
      %v813 = vpack.c.bf16 %v799, %v798
      %v814 = vpack.c.bf16 %v801, %v800
      %v815 = vpack.c.bf16 %v802, %v802
      %v816 = vld [vmem:[#allocation8] sm:$0xf]
      %v817 = vld [vmem:[#allocation8 + $0x4] sm:$0xf]
      %v818 = vld [vmem:[#allocation8 + $0x8] sm:$0xf]
      %v819 = vld [vmem:[#allocation8 + $0xc] sm:$0xf]
      %v820 = vld [vmem:[#allocation8 + $0x10] sm:$0xf]
      %v821 = vld [vmem:[#allocation8 + $0x14] sm:$0xf]
      %v822 = vld [vmem:[#allocation8 + $0x18] sm:$0xf]
      %v823 = vld [vmem:[#allocation8 + $0x1c] sm:$0xf]
      %v824 = vld [vmem:[#allocation8 + $0x20] sm:$0xf]
      %v825 = vld [vmem:[#allocation8 + $0x24] sm:$0xf]
      %v826 = vld [vmem:[#allocation8 + $0x28] sm:$0xf]
      %v827 = vld [vmem:[#allocation8 + $0x2c] sm:$0xf]
      %v828 = vld [vmem:[#allocation8 + $0x30] sm:$0xf]
      %v829 = vld [vmem:[#allocation8 + $0x34] sm:$0xf]
      %v830 = vld [vmem:[#allocation8 + $0x38] sm:$0xf]
      %v831 = vld [vmem:[#allocation8 + $0x3c] sm:$0xf]
      %v832 = vld [vmem:[#allocation6] sm:$0xf]
      %v833 = vld [vmem:[#allocation6 + $0x4] sm:$0xf]
      %v834 = vld [vmem:[#allocation6 + $0x8] sm:$0xf]
      %v835 = vld [vmem:[#allocation6 + $0xc] sm:$0xf]
      %v836 = vld [vmem:[#allocation6 + $0x10] sm:$0xf]
      %v837 = vld [vmem:[#allocation6 + $0x14] sm:$0xf]
      %v838 = vld [vmem:[#allocation6 + $0x18] sm:$0xf]
      %v839 = vld [vmem:[#allocation6 + $0x1c] sm:$0xf]
      %v840 = vld [vmem:[#allocation6 + $0x20] sm:$0xf]
      %v841 = vld [vmem:[#allocation6 + $0x24] sm:$0xf]
      %v842 = vld [vmem:[#allocation6 + $0x28] sm:$0xf]
      %v843 = vld [vmem:[#allocation6 + $0x2c] sm:$0xf]
      %v844 = vld [vmem:[#allocation6 + $0x30] sm:$0xf]
      %v845 = vld [vmem:[#allocation6 + $0x34] sm:$0xf]
      %v846 = vld [vmem:[#allocation6 + $0x38] sm:$0xf]
      %v847 = vld [vmem:[#allocation6 + $0x3c] sm:$0xf]
      %v848 = vld [vmem:[#allocation6 + $0x40] sm:$0xf]
      %v849 = vld [vmem:[#allocation6 + $0x44] sm:$0xf]
      %v850 = vld [vmem:[#allocation6 + $0x48] sm:$0xf]
      %v851 = vld [vmem:[#allocation6 + $0x4c] sm:$0xf]
      %v852 = vld [vmem:[#allocation6 + $0x50] sm:$0xf]
      %v853 = vld [vmem:[#allocation6 + $0x54] sm:$0xf]
      %v854 = vld [vmem:[#allocation6 + $0x58] sm:$0xf]
      %v855 = vld [vmem:[#allocation6 + $0x5c] sm:$0xf]
      %v856 = vld [vmem:[#allocation6 + $0x60] sm:$0xf]
      %v857 = vld [vmem:[#allocation9] sm:$0xf]
      %v858 = vld [vmem:[#allocation9 + $0x4] sm:$0xf]
      %v859 = vld [vmem:[#allocation9 + $0x8] sm:$0xf]
      %v860 = vld [vmem:[#allocation9 + $0xc] sm:$0xf]
      %v861 = vld [vmem:[#allocation9 + $0x10] sm:$0xf]
      %v862 = vld [vmem:[#allocation9 + $0x14] sm:$0xf]
      %v863 = vld [vmem:[#allocation9 + $0x18] sm:$0xf]
      %v864 = vld [vmem:[#allocation9 + $0x1c] sm:$0xf]
      %v865 = vld [vmem:[#allocation9 + $0x20] sm:$0xf]
      %v866 = vld [vmem:[#allocation9 + $0x24] sm:$0xf]
      %v867 = vld [vmem:[#allocation9 + $0x28] sm:$0xf]
      %v868 = vld [vmem:[#allocation9 + $0x2c] sm:$0xf]
      %v869 = vld [vmem:[#allocation9 + $0x30] sm:$0xf]
      %v870 = vld [vmem:[#allocation9 + $0x34] sm:$0xf]
      %v871 = vld [vmem:[#allocation9 + $0x38] sm:$0xf]
      %v872 = vld [vmem:[#allocation9 + $0x3c] sm:$0xf]
      %v898 = vunpack.c.l.b16 %v832
      %v899 = vunpack.c.l.b16 %v833
      %v900 = vunpack.c.l.b16 %v834
      %v901 = vunpack.c.l.b16 %v835
      %v902 = vunpack.c.l.b16 %v836
      %v903 = vunpack.c.l.b16 %v837
      %v904 = vunpack.c.l.b16 %v838
      %v905 = vunpack.c.l.b16 %v839
      %v906 = vunpack.c.l.b16 %v840
      %v907 = vunpack.c.l.b16 %v841
      %v908 = vunpack.c.l.b16 %v842
      %v909 = vunpack.c.l.b16 %v843
      %v910 = vunpack.c.l.b16 %v844
      %v911 = vunpack.c.l.b16 %v845
      %v912 = vunpack.c.l.b16 %v846
      %v913 = vunpack.c.l.b16 %v847
      %v914 = vunpack.c.l.b16 %v848
      %v915 = vunpack.c.l.b16 %v849
      %v916 = vunpack.c.l.b16 %v850
      %v917 = vunpack.c.l.b16 %v851
      %v918 = vunpack.c.l.b16 %v852
      %v919 = vunpack.c.l.b16 %v853
      %v920 = vunpack.c.l.b16 %v854
      %v921 = vunpack.c.l.b16 %v855
      %v922 = vunpack.c.l.b16 %v856
      %v923 = vpack.c.b16 %v899, %v898
      %v924 = vpack.c.b16 %v901, %v900
      %v925 = vpack.c.b16 %v903, %v902
      %v926 = vpack.c.b16 %v905, %v904
      %v927 = vpack.c.b16 %v907, %v906
      %v928 = vpack.c.b16 %v909, %v908
      %v929 = vpack.c.b16 %v911, %v910
      %v930 = vpack.c.b16 %v913, %v912
      %v931 = vpack.c.b16 %v915, %v914
      %v932 = vpack.c.b16 %v917, %v916
      %v933 = vpack.c.b16 %v919, %v918
      %v934 = vpack.c.b16 %v921, %v920
      %v935 = vpack.c.b16 %v922, %v922
      %v965 = vunpack.c.l.b16 %v857
      %v966 = vunpack.c.l.b16 %v858
      %v967 = vunpack.c.l.b16 %v859
      %v968 = vunpack.c.l.b16 %v860
      %v969 = vunpack.c.l.b16 %v861
      %v970 = vunpack.c.l.b16 %v862
      %v971 = vunpack.c.l.b16 %v863
      %v972 = vunpack.c.l.b16 %v864
      %v973 = vunpack.c.l.b16 %v865
      %v974 = vunpack.c.l.b16 %v866
      %v975 = vunpack.c.l.b16 %v867
      %v976 = vunpack.c.l.b16 %v868
      %v977 = vunpack.c.l.b16 %v869
      %v978 = vunpack.c.l.b16 %v870
      %v979 = vunpack.c.l.b16 %v871
      %v980 = vunpack.c.l.b16 %v872
      %v981 = vpack.c.b16 %v966, %v965
      %v982 = vpack.c.b16 %v968, %v967
      %v983 = vpack.c.b16 %v970, %v969
      %v984 = vpack.c.b16 %v972, %v971
      %v985 = vpack.c.b16 %v974, %v973
      %v986 = vpack.c.b16 %v976, %v975
      %v987 = vpack.c.b16 %v978, %v977
      %v988 = vpack.c.b16 %v980, %v979
      %997 = vmatprep.subr.bf16.mxu0 0
      %998 = vmatpush1.bf16.msra.mxu0 %v981
      %999 = vmatprep.subr.bf16.mxu0 0
      %1000 = vmatpush1.bf16.msra.mxu0 %v982
      %1001 = vmatprep.subr.bf16.mxu0 0
      %1002 = vmatpush1.bf16.msra.mxu0 %v983
      %1003 = vmatprep.subr.bf16.mxu0 0
      %1004 = vmatpush1.bf16.msra.mxu0 %v984
      %1005 = vmatprep.subr.bf16.mxu0 0
      %1006 = vmatpush1.bf16.msra.mxu0 %v985
      %1007 = vmatprep.subr.bf16.mxu0 0
      %1008 = vmatpush1.bf16.msra.mxu0 %v986
      %1009 = vmatprep.subr.bf16.mxu0 0
      %1010 = vmatpush1.bf16.msra.mxu0 %v987
      %1011 = vmatprep.subr.bf16.mxu0 0
      %1012 = vmatpush1.bf16.msra.mxu0 %v988
      %1013 = vmatprep.subr.bf16.mxu0 0
      %1014 = vmatpush1.bf16.msra.mxu0 0
      %1015 = vmatprep.subr.bf16.mxu0 0
      %1016 = vmatpush1.bf16.msra.mxu0 0
      %1017 = vmatprep.subr.bf16.mxu0 0
      %1018 = vmatpush1.bf16.msra.mxu0 0
      %1019 = vmatprep.subr.bf16.mxu0 0
      %1020 = vmatpush1.bf16.msra.mxu0 0
      %1021 = vmatprep.subr.bf16.mxu0 0
      %1022 = vmatpush1.bf16.msra.mxu0 0
      %1023 = vmatprep.subr.bf16.mxu0 0
      %1024 = vmatpush1.bf16.msra.mxu0 0
      %1025 = vmatprep.subr.bf16.mxu0 0
      %1026 = vmatpush1.bf16.msra.mxu0 0
      %1027 = vmatprep.subr.bf16.mxu0 0
      %1028 = vmatpush1.bf16.msra.mxu0 0
      %1029 = vmatprep.mubr.bf16.mxu0 0
      %1030 = vmatmul.mubr.bf16.gmra.mrb[0].mxu0 %v923
      %v1031 = vpop.f32.mrb[0].mxu0
      %v1032 = vadd.f32 0.0, %v1031
      %v1033 = vpop.f32.mrb[0].mxu0
      %v1034 = vpop.f32.mrb[0].mxu0
      %v1035 = vadd.f32 0.0, %v1034
      %v1036 = vpop.f32.mrb[0].mxu0
      %1037 = vmatprep.mubr.bf16.mxu0 0
      %1038 = vmatmul.mubr.bf16.gmra.mrb[0].mxu0 %v924
      %v1039 = vpop.f32.mrb[0].mxu0
      %v1040 = vadd.f32 0.0, %v1039
      %v1041 = vpop.f32.mrb[0].mxu0
      %v1042 = vpop.f32.mrb[0].mxu0
      %v1043 = vadd.f32 0.0, %v1042
      %v1044 = vpop.f32.mrb[0].mxu0
      %1045 = vmatprep.mubr.bf16.mxu0 0
      %1046 = vmatmul.mubr.bf16.gmra.mrb[0].mxu0 %v925
      %v1047 = vpop.f32.mrb[0].mxu0
      %v1048 = vadd.f32 0.0, %v1047
      %v1049 = vpop.f32.mrb[0].mxu0
      %v1050 = vpop.f32.mrb[0].mxu0
      %v1051 = vadd.f32 0.0, %v1050
      %v1052 = vpop.f32.mrb[0].mxu0
      %1053 = vmatprep.mubr.bf16.mxu0 0
      %1054 = vmatmul.mubr.bf16.gmra.mrb[0].mxu0 %v926
      %v1055 = vpop.f32.mrb[0].mxu0
      %v1056 = vadd.f32 0.0, %v1055
      %v1057 = vpop.f32.mrb[0].mxu0
      %v1058 = vpop.f32.mrb[0].mxu0
      %v1059 = vadd.f32 0.0, %v1058
      %v1060 = vpop.f32.mrb[0].mxu0
      %1061 = vmatprep.mubr.bf16.mxu0 0
      %1062 = vmatmul.mubr.bf16.gmra.mrb[0].mxu0 %v927
      %v1063 = vpop.f32.mrb[0].mxu0
      %v1064 = vadd.f32 0.0, %v1063
      %v1065 = vpop.f32.mrb[0].mxu0
      %v1066 = vpop.f32.mrb[0].mxu0
      %v1067 = vadd.f32 0.0, %v1066
      %v1068 = vpop.f32.mrb[0].mxu0
      %1069 = vmatprep.mubr.bf16.mxu0 0
      %1070 = vmatmul.mubr.bf16.gmra.mrb[0].mxu0 %v928
      %v1071 = vpop.f32.mrb[0].mxu0
      %v1072 = vadd.f32 0.0, %v1071
      %v1073 = vpop.f32.mrb[0].mxu0
      %v1074 = vpop.f32.mrb[0].mxu0
      %v1075 = vadd.f32 0.0, %v1074
      %v1076 = vpop.f32.mrb[0].mxu0
      %1077 = vmatprep.mubr.bf16.mxu0 0
      %1078 = vmatmul.mubr.bf16.gmra.mrb[0].mxu0 %v929
      %v1079 = vpop.f32.mrb[0].mxu0
      %v1080 = vadd.f32 0.0, %v1079
      %v1081 = vpop.f32.mrb[0].mxu0
      %v1082 = vpop.f32.mrb[0].mxu0
      %v1083 = vadd.f32 0.0, %v1082
      %v1084 = vpop.f32.mrb[0].mxu0
      %1085 = vmatprep.mubr.bf16.mxu0 0
      %1086 = vmatmul.mubr.bf16.gmra.mrb[0].mxu0 %v930
      %v1087 = vpop.f32.mrb[0].mxu0
      %v1088 = vadd.f32 0.0, %v1087
      %v1089 = vpop.f32.mrb[0].mxu0
      %v1090 = vpop.f32.mrb[0].mxu0
      %v1091 = vadd.f32 0.0, %v1090
      %v1092 = vpop.f32.mrb[0].mxu0
      %1093 = vmatprep.mubr.bf16.mxu0 0
      %1094 = vmatmul.mubr.bf16.gmra.mrb[0].mxu0 %v931
      %v1095 = vpop.f32.mrb[0].mxu0
      %v1096 = vadd.f32 0.0, %v1095
      %v1097 = vpop.f32.mrb[0].mxu0
      %v1098 = vpop.f32.mrb[0].mxu0
      %v1099 = vadd.f32 0.0, %v1098
      %v1100 = vpop.f32.mrb[0].mxu0
      %1101 = vmatprep.mubr.bf16.mxu0 0
      %1102 = vmatmul.mubr.bf16.gmra.mrb[0].mxu0 %v932
      %v1103 = vpop.f32.mrb[0].mxu0
      %v1104 = vadd.f32 0.0, %v1103
      %v1105 = vpop.f32.mrb[0].mxu0
      %v1106 = vpop.f32.mrb[0].mxu0
      %v1107 = vadd.f32 0.0, %v1106
      %v1108 = vpop.f32.mrb[0].mxu0
      %1109 = vmatprep.mubr.bf16.mxu0 0
      %1110 = vmatmul.mubr.bf16.gmra.mrb[0].mxu0 %v933
      %v1111 = vpop.f32.mrb[0].mxu0
      %v1112 = vadd.f32 0.0, %v1111
      %v1113 = vpop.f32.mrb[0].mxu0
      %v1114 = vpop.f32.mrb[0].mxu0
      %v1115 = vadd.f32 0.0, %v1114
      %v1116 = vpop.f32.mrb[0].mxu0
      %1117 = vmatprep.mubr.bf16.mxu0 0
      %1118 = vmatmul.mubr.bf16.gmra.mrb[0].mxu0 %v934
      %v1119 = vpop.f32.mrb[0].mxu0
      %v1120 = vadd.f32 0.0, %v1119
      %v1121 = vpop.f32.mrb[0].mxu0
      %v1122 = vpop.f32.mrb[0].mxu0
      %v1123 = vadd.f32 0.0, %v1122
      %v1124 = vpop.f32.mrb[0].mxu0
      %1125 = vmatprep.mubr.bf16.mxu0 0
      %1126 = vmatmul.mubr.bf16.gmra.mrb[0].mxu0 %v935
      %v1127 = vpop.f32.mrb[0].mxu0
      %v1128 = vadd.f32 0.0, %v1127
      %v1129 = vpop.f32.mrb[0].mxu0
      %v1130 = vpop.f32.mrb[0].mxu0
      %v1131 = vpop.f32.mrb[0].mxu0
      %1132 = vdwg.mxu0
      %v1149 = vunpack.c.l.b16 %v816
      %v1150 = vunpack.c.l.b16 %v817
      %v1151 = vunpack.c.l.b16 %v818
      %v1152 = vunpack.c.l.b16 %v819
      %v1153 = vunpack.c.l.b16 %v820
      %v1154 = vunpack.c.l.b16 %v821
      %v1155 = vunpack.c.l.b16 %v822
      %v1156 = vunpack.c.l.b16 %v823
      %v1157 = vunpack.c.l.b16 %v824
      %v1158 = vunpack.c.l.b16 %v825
      %v1159 = vunpack.c.l.b16 %v826
      %v1160 = vunpack.c.l.b16 %v827
      %v1161 = vunpack.c.l.b16 %v828
      %v1162 = vunpack.c.l.b16 %v829
      %v1163 = vunpack.c.l.b16 %v830
      %v1164 = vunpack.c.l.b16 %v831
      %v1165 = vpack.c.b16 %v1150, %v1149
      %v1166 = vpack.c.b16 %v1152, %v1151
      %v1167 = vpack.c.b16 %v1154, %v1153
      %v1168 = vpack.c.b16 %v1156, %v1155
      %v1169 = vpack.c.b16 %v1158, %v1157
      %v1170 = vpack.c.b16 %v1160, %v1159
      %v1171 = vpack.c.b16 %v1162, %v1161
      %v1172 = vpack.c.b16 %v1164, %v1163
      %1181 = vmatprep.subr.bf16.mxu0 0
      %1182 = vmatpush1.bf16.msra.mxu0 %v1165
      %1183 = vmatprep.subr.bf16.mxu0 0
      %1184 = vmatpush1.bf16.msra.mxu0 %v1166
      %1185 = vmatprep.subr.bf16.mxu0 0
      %1186 = vmatpush1.bf16.msra.mxu0 %v1167
      %1187 = vmatprep.subr.bf16.mxu0 0
      %1188 = vmatpush1.bf16.msra.mxu0 %v1168
      %1189 = vmatprep.subr.bf16.mxu0 0
      %1190 = vmatpush1.bf16.msra.mxu0 %v1169
      %1191 = vmatprep.subr.bf16.mxu0 0
      %1192 = vmatpush1.bf16.msra.mxu0 %v1170
      %1193 = vmatprep.subr.bf16.mxu0 0
      %1194 = vmatpush1.bf16.msra.mxu0 %v1171
      %1195 = vmatprep.subr.bf16.mxu0 0
      %1196 = vmatpush1.bf16.msra.mxu0 %v1172
      %1197 = vmatprep.subr.bf16.mxu0 0
      %1198 = vmatpush1.bf16.msra.mxu0 0
      %1199 = vmatprep.subr.bf16.mxu0 0
      %1200 = vmatpush1.bf16.msra.mxu0 0
      %1201 = vmatprep.subr.bf16.mxu0 0
      %1202 = vmatpush1.bf16.msra.mxu0 0
      %1203 = vmatprep.subr.bf16.mxu0 0
      %1204 = vmatpush1.bf16.msra.mxu0 0
      %1205 = vmatprep.subr.bf16.mxu0 0
      %1206 = vmatpush1.bf16.msra.mxu0 0
      %1207 = vmatprep.subr.bf16.mxu0 0
      %1208 = vmatpush1.bf16.msra.mxu0 0
      %1209 = vmatprep.subr.bf16.mxu0 0
      %1210 = vmatpush1.bf16.msra.mxu0 0
      %1211 = vmatprep.subr.bf16.mxu0 0
      %1212 = vmatpush1.bf16.msra.mxu0 0
      %1213 = vmatprep.mubr.bf16.mxu0 0
      %1214 = vmatmul.mubr.bf16.gmra.mrb[0].mxu0 %v803
      %v1215 = vpop.f32.mrb[0].mxu0
      %v1216 = vadd.f32 %v1032, %v1215
      %v1217 = vpop.f32.mrb[0].mxu0
      %v1218 = vpop.f32.mrb[0].mxu0
      %v1219 = vadd.f32 %v1035, %v1218
      %v1220 = vpop.f32.mrb[0].mxu0
      %1221 = vmatprep.mubr.bf16.mxu0 0
      %1222 = vmatmul.mubr.bf16.gmra.mrb[0].mxu0 %v804
      %v1223 = vpop.f32.mrb[0].mxu0
      %v1224 = vadd.f32 %v1040, %v1223
      %v1225 = vpop.f32.mrb[0].mxu0
      %v1226 = vpop.f32.mrb[0].mxu0
      %v1227 = vadd.f32 %v1043, %v1226
      %v1228 = vpop.f32.mrb[0].mxu0
      %1229 = vmatprep.mubr.bf16.mxu0 0
      %1230 = vmatmul.mubr.bf16.gmra.mrb[0].mxu0 %v805
      %v1231 = vpop.f32.mrb[0].mxu0
      %v1232 = vadd.f32 %v1048, %v1231
      %v1233 = vpop.f32.mrb[0].mxu0
      %v1234 = vpop.f32.mrb[0].mxu0
      %v1235 = vadd.f32 %v1051, %v1234
      %v1236 = vpop.f32.mrb[0].mxu0
      %1237 = vmatprep.mubr.bf16.mxu0 0
      %1238 = vmatmul.mubr.bf16.gmra.mrb[0].mxu0 %v806
      %v1239 = vpop.f32.mrb[0].mxu0
      %v1240 = vadd.f32 %v1056, %v1239
      %v1241 = vpop.f32.mrb[0].mxu0
      %v1242 = vpop.f32.mrb[0].mxu0
      %v1243 = vadd.f32 %v1059, %v1242
      %v1244 = vpop.f32.mrb[0].mxu0
      %1245 = vmatprep.mubr.bf16.mxu0 0
      %1246 = vmatmul.mubr.bf16.gmra.mrb[0].mxu0 %v807
      %v1247 = vpop.f32.mrb[0].mxu0
      %v1248 = vadd.f32 %v1064, %v1247
      %v1249 = vpop.f32.mrb[0].mxu0
      %v1250 = vpop.f32.mrb[0].mxu0
      %v1251 = vadd.f32 %v1067, %v1250
      %v1252 = vpop.f32.mrb[0].mxu0
      %1253 = vmatprep.mubr.bf16.mxu0 0
      %1254 = vmatmul.mubr.bf16.gmra.mrb[0].mxu0 %v808
      %v1255 = vpop.f32.mrb[0].mxu0
      %v1256 = vadd.f32 %v1072, %v1255
      %v1257 = vpop.f32.mrb[0].mxu0
      %v1258 = vpop.f32.mrb[0].mxu0
      %v1259 = vadd.f32 %v1075, %v1258
      %v1260 = vpop.f32.mrb[0].mxu0
      %1261 = vmatprep.mubr.bf16.mxu0 0
      %1262 = vmatmul.mubr.bf16.gmra.mrb[0].mxu0 %v809
      %v1263 = vpop.f32.mrb[0].mxu0
      %v1264 = vadd.f32 %v1080, %v1263
      %v1265 = vpop.f32.mrb[0].mxu0
      %v1266 = vpop.f32.mrb[0].mxu0
      %v1267 = vadd.f32 %v1083, %v1266
      %v1268 = vpop.f32.mrb[0].mxu0
      %1269 = vmatprep.mubr.bf16.mxu0 0
      %1270 = vmatmul.mubr.bf16.gmra.mrb[0].mxu0 %v810
      %v1271 = vpop.f32.mrb[0].mxu0
      %v1272 = vadd.f32 %v1088, %v1271
      %v1273 = vpop.f32.mrb[0].mxu0
      %v1274 = vpop.f32.mrb[0].mxu0
      %v1275 = vadd.f32 %v1091, %v1274
      %v1276 = vpop.f32.mrb[0].mxu0
      %1277 = vmatprep.mubr.bf16.mxu0 0
      %1278 = vmatmul.mubr.bf16.gmra.mrb[0].mxu0 %v811
      %v1279 = vpop.f32.mrb[0].mxu0
      %v1280 = vadd.f32 %v1096, %v1279
      %v1281 = vpop.f32.mrb[0].mxu0
      %v1282 = vpop.f32.mrb[0].mxu0
      %v1283 = vadd.f32 %v1099, %v1282
      %v1284 = vpop.f32.mrb[0].mxu0
      %1285 = vmatprep.mubr.bf16.mxu0 0
      %1286 = vmatmul.mubr.bf16.gmra.mrb[0].mxu0 %v812
      %v1287 = vpop.f32.mrb[0].mxu0
      %v1288 = vadd.f32 %v1104, %v1287
      %v1289 = vpop.f32.mrb[0].mxu0
      %v1290 = vpop.f32.mrb[0].mxu0
      %v1291 = vadd.f32 %v1107, %v1290
      %v1292 = vpop.f32.mrb[0].mxu0
      %1293 = vmatprep.mubr.bf16.mxu0 0
      %1294 = vmatmul.mubr.bf16.gmra.mrb[0].mxu0 %v813
      %v1295 = vpop.f32.mrb[0].mxu0
      %v1296 = vadd.f32 %v1112, %v1295
      %v1297 = vpop.f32.mrb[0].mxu0
      %v1298 = vpop.f32.mrb[0].mxu0
      %v1299 = vadd.f32 %v1115, %v1298
      %v1300 = vpop.f32.mrb[0].mxu0
      %1301 = vmatprep.mubr.bf16.mxu0 0
      %1302 = vmatmul.mubr.bf16.gmra.mrb[0].mxu0 %v814
      %v1303 = vpop.f32.mrb[0].mxu0
      %v1304 = vadd.f32 %v1120, %v1303
      %v1305 = vpop.f32.mrb[0].mxu0
      %v1306 = vpop.f32.mrb[0].mxu0
      %v1307 = vadd.f32 %v1123, %v1306
      %v1308 = vpop.f32.mrb[0].mxu0
      %1309 = vmatprep.mubr.bf16.mxu0 0
      %1310 = vmatmul.mubr.bf16.gmra.mrb[0].mxu0 %v815
      %v1311 = vpop.f32.mrb[0].mxu0
      %v1312 = vadd.f32 %v1128, %v1311
      %v1313 = vpop.f32.mrb[0].mxu0
      %v1314 = vpop.f32.mrb[0].mxu0
      %v1315 = vpop.f32.mrb[0].mxu0
      %1316 = vdwg.mxu0
      %1317 = vst [vmem:[#allocation11] sm:$0xff] %v1216
      %1318 = vst [vmem:[#allocation11 + $0x8] sm:$0xff] %v1219
      %1319 = vst [vmem:[#allocation11 + $0x10] sm:$0xff] %v1224
      %1320 = vst [vmem:[#allocation11 + $0x18] sm:$0xff] %v1227
      %1321 = vst [vmem:[#allocation11 + $0x20] sm:$0xff] %v1232
      %1322 = vst [vmem:[#allocation11 + $0x28] sm:$0xff] %v1235
      %1323 = vst [vmem:[#allocation11 + $0x30] sm:$0xff] %v1240
      %1324 = vst [vmem:[#allocation11 + $0x38] sm:$0xff] %v1243
      %1325 = vst [vmem:[#allocation11 + $0x40] sm:$0xff] %v1248
      %1326 = vst [vmem:[#allocation11 + $0x48] sm:$0xff] %v1251
      %1327 = vst [vmem:[#allocation11 + $0x50] sm:$0xff] %v1256
      %1328 = vst [vmem:[#allocation11 + $0x58] sm:$0xff] %v1259
      %1329 = vst [vmem:[#allocation11 + $0x60] sm:$0xff] %v1264
      %1330 = vst [vmem:[#allocation11 + $0x68] sm:$0xff] %v1267
      %1331 = vst [vmem:[#allocation11 + $0x70] sm:$0xff] %v1272
      %1332 = vst [vmem:[#allocation11 + $0x78] sm:$0xff] %v1275
      %1333 = vst [vmem:[#allocation11 + $0x80] sm:$0xff] %v1280
      %1334 = vst [vmem:[#allocation11 + $0x88] sm:$0xff] %v1283
      %1335 = vst [vmem:[#allocation11 + $0x90] sm:$0xff] %v1288
      %1336 = vst [vmem:[#allocation11 + $0x98] sm:$0xff] %v1291
      %1337 = vst [vmem:[#allocation11 + $0xa0] sm:$0xff] %v1296
      %1338 = vst [vmem:[#allocation11 + $0xa8] sm:$0xff] %v1299
      %1339 = vst [vmem:[#allocation11 + $0xb0] sm:$0xff] %v1304
      %1340 = vst [vmem:[#allocation11 + $0xb8] sm:$0xff] %v1307
      %1341 = vst [vmem:[#allocation11 + $0xc0] sm:$0xff] %v1312
    $region49: #{tpu_custom_call.1} parent=1 // pred_fallthru
      _
    // Predicated region
    $region50: #{tpu_custom_call.1} parent=1 // pred_check
      _
    $region51: #{tpu_custom_call.1} parent=1 // pred_check_branch
      %1343 = sbr.rel (0) target = $region53
    $region52: #{tpu_custom_call.1} parent=1 // pred_region
      %s1345 = ssub.s32 3200, 3200
      %1346 = vsyncadd [#allocation5], %s1345
      %s1347 = sshll.u32 [#allocation11], 4
      %s1348 = int_to_ptr.vmem [resolvable:$true] %s1347
      %1353 = dma.vmem_to_hbm [thread:$0]  %s1348, 3200, %s6, [#allocation5], 128, 128, 8
    $region53: #{tpu_custom_call.1} parent=1 // pred_fallthru
      _
    // Predicated region
    $region54: #{tpu_custom_call.1} parent=1 // pred_check
      _
    $region55: #{tpu_custom_call.1} parent=1 // pred_check_branch
      %1355 = sbr.rel (0) target = $region57
    $region56: #{tpu_custom_call.1} parent=1 // pred_region
      %1356 = dma.done [#allocation5], 3200
    $region57: #{tpu_custom_call.1} parent=1 // pred_fallthru
      _
    %1357 = vsyncpa [#allocation4], 1
    %1358 = vsyncpa [#allocation7], 1
    %1359 = vsyncpa [#allocation10], 1
    %1360 = vsyncpa [#allocation5], 1

</llo_original>
